<compile_context>
chip_gen: v7x
topology: tpu7x:2x2x1
jax: 0.10.0
libtpu: 0.0.40
codegen_flags: <defaults>
</compile_context>

<pallas_src>
import functools
import math

import jax
import jax.numpy as jnp
from jax import lax
from jax.experimental import pallas as pl
from jax.experimental.pallas import tpu as pltpu


_SQRT2_INV = 1.0 / math.sqrt(2.0)
_TANH_C = math.sqrt(2.0 / math.pi)


def _gelu(x, use_tanh):
    if use_tanh:
        # tanh approximation: transcendental lands on the EUP slot (v5e relief).
        return 0.5 * x * (1.0 + jnp.tanh(_TANH_C * (x + 0.044715 * x * x * x)))
    # Exact erf-based GELU, matching the PyTorch reference `gelu`.
    return x * 0.5 * (1.0 + lax.erf(x * _SQRT2_INV))


def _round_up(n, m):
    return ((n + m - 1) // m) * m


def _pick_dff_chunk(d_ff_pad, requested):
    """Largest multiple of 128 <= requested that divides d_ff_pad."""
    c = min(_round_up(max(requested, 128), 128), d_ff_pad)
    c = (c // 128) * 128
    while d_ff_pad % c != 0:
        c -= 128
    return c


def _vmem_budget():
    """(physical VMEM, scoped-limit request) — arch aware with headroom."""
    try:
        cap = int(pltpu.get_tpu_info().vmem_capacity_bytes)
    except Exception:  # pragma: no cover - conservative fallback
        cap = 128 * 1024 * 1024
    # Leave ~12 MiB for compiler-internal scratch / semaphores / spill slots;
    # never request more than ~110 MiB even on 128 MiB parts.
    limit = max(32 * 1024 * 1024, min(cap - 12 * 1024 * 1024, 110 * 1024 * 1024))
    return cap, limit


def ffn_kernel(x_ref, w1_ref, b1_ref, w2_ref, b2_ref, gamma_ref, beta_ref,
               o_ref, acc_ref, *,
               d_model, d_model_pad, d_ff_chunk, n_chunks, eps, use_tanh_gelu):
    # Residual path stays f32; MXU operands are cast to the weight dtype (bf16
    # by default) with f32 accumulation via preferred_element_type.
    x = x_ref[...].astype(jnp.float32)          # (T, d_model_pad)
    x_mm = x_ref[...].astype(w1_ref.dtype)      # MXU LHS

    acc_ref[...] = jnp.zeros_like(acc_ref)      # (T, d_model_pad) f32

    def chunk_body(c, carry):
        off = pl.multiple_of(c * d_ff_chunk, 128)
        w1_c = w1_ref[:, pl.ds(off, d_ff_chunk)]                  # (d_model_pad, chunk)
        b1_c = b1_ref[:, pl.ds(off, d_ff_chunk)].astype(jnp.float32)
        h = jnp.dot(x_mm, w1_c, preferred_element_type=jnp.float32) + b1_c
        h = _gelu(h, use_tanh_gelu)                               # (T, chunk) f32
        w2_c = w2_ref[pl.ds(off, d_ff_chunk), :]                  # (chunk, d_model_pad)
        acc_ref[...] += jnp.dot(h.astype(w2_ref.dtype), w2_c,
                                preferred_element_type=jnp.float32)
        return carry

    lax.fori_loop(0, n_chunks, chunk_body, 0, unroll=(n_chunks <= 4))

    b2 = b2_ref[...].astype(jnp.float32)
    gamma = gamma_ref[...].astype(jnp.float32)
    beta = beta_ref[...].astype(jnp.float32)

    # fc2 output + bias + residual.  Padded d_model lanes remain exactly zero
    # (padded W2 columns, b2 lanes and x lanes are all zero).
    y = acc_ref[...] + b2 + x

    # LayerNorm over the true (unpadded) d_model lanes.  All-zero padded rows
    # give var=0 -> rsqrt(eps): finite, harmless, and sliced off by the caller.
    inv_d = 1.0 / d_model
    mean = jnp.sum(y, axis=-1, keepdims=True) * inv_d
    diff = y - mean
    if d_model_pad != d_model:
        col = lax.broadcasted_iota(jnp.int32, (1, d_model_pad), 1)
        diff = jnp.where(col < d_model, diff, 0.0)
    var = jnp.sum(diff * diff, axis=-1, keepdims=True) * inv_d
    norm = diff * lax.rsqrt(var + eps)
    o_ref[...] = (norm * gamma + beta).astype(o_ref.dtype)


def prepare_ffn_params(w1, b1, w2, b2, gamma, beta, matmul_dtype=jnp.bfloat16):
    """Pad/cast parameters ONCE (hoisted out of the per-call path).

    w1: (d_model, d_ff), w2: (d_ff, d_model) stored as (in_features, out_features).
    Returns (padded_params, (d_model, d_ff)).
    """
    d_model, d_ff = w1.shape
    d_model_pad = _round_up(d_model, 128)
    d_ff_pad = _round_up(d_ff, 128)
    w1_p = jnp.pad(w1, ((0, d_model_pad - d_model), (0, d_ff_pad - d_ff))).astype(matmul_dtype)
    w2_p = jnp.pad(w2, ((0, d_ff_pad - d_ff), (0, d_model_pad - d_model))).astype(matmul_dtype)
    b1_p = jnp.pad(b1, (0, d_ff_pad - d_ff)).reshape(1, d_ff_pad).astype(jnp.float32)
    b2_p = jnp.pad(b2, (0, d_model_pad - d_model)).reshape(1, d_model_pad).astype(jnp.float32)
    gamma_p = jnp.pad(gamma, (0, d_model_pad - d_model)).reshape(1, d_model_pad).astype(jnp.float32)
    beta_p = jnp.pad(beta, (0, d_model_pad - d_model)).reshape(1, d_model_pad).astype(jnp.float32)
    return (w1_p, b1_p, w2_p, b2_p, gamma_p, beta_p), (d_model, d_ff)


@functools.partial(
    jax.jit,
    static_argnames=("d_model", "d_ff", "tile_rows", "d_ff_chunk", "eps", "use_tanh_gelu"))
def poswise_ffn_prepared(x, w1_p, b1_p, w2_p, b2_p, gamma_p, beta_p, *,
                         d_model, d_ff, tile_rows=None, d_ff_chunk=512,
                         eps=1e-5, use_tanh_gelu=False):
    """PoswiseFeedForwardNet forward on pre-padded/pre-cast parameters.

    x: (batch, seq, d_model).  Parameters come from prepare_ffn_params().
    """
    B, S, _ = x.shape
    rows = B * S
    d_model_pad = w1_p.shape[0]
    d_ff_pad = w1_p.shape[1]

    vmem_cap, vmem_limit = _vmem_budget()

    # ---- row-tile selection ------------------------------------------------
    if tile_rows is None:
        # bigger tiles on 128-MiB-VMEM chips (v5e/v6e), conservative on v7x.
        tile_rows = 512 if vmem_cap >= 96 * 1024 * 1024 else 256
    tile_rows = max(8, min(tile_rows, _round_up(rows, 8)))
    tile_rows = _round_up(tile_rows, 8)                 # (8,128) tiling rule
    if rows >= 256:
        tile_rows = _round_up(tile_rows, 128)           # keep matmul M MXU-shaped
    # megacore: ensure >= 2 grid steps on the "parallel" axis when possible
    if rows > 8 and -(-rows // tile_rows) < 2:
        tile_rows = max(8, _round_up(-(-rows // 2), 8))
    rows_pad = _round_up(rows, tile_rows)
    grid = (rows_pad // tile_rows,)

    # ---- d_ff chunking -----------------------------------------------------
    d_ff_chunk = _pick_dff_chunk(d_ff_pad, d_ff_chunk)
    n_chunks = d_ff_pad // d_ff_chunk

    # ---- x: pad only if needed, keep native dtype (cast in-kernel) ----------
    x2d = x.reshape(rows, d_model)
    if rows_pad != rows or d_model_pad != d_model:
        x2d = jnp.pad(x2d, ((0, rows_pad - rows), (0, d_model_pad - d_model)))

    kernel = functools.partial(
        ffn_kernel, d_model=d_model, d_model_pad=d_model_pad,
        d_ff_chunk=d_ff_chunk, n_chunks=n_chunks, eps=eps,
        use_tanh_gelu=use_tanh_gelu)

    # Constant index_map -> keep a single resident buffer (no wasted 2nd buffer).
    resident = pl.Buffered(1)

    x_bytes = jnp.dtype(x.dtype).itemsize
    w_bytes = jnp.dtype(w1_p.dtype).itemsize
    cost = pl.CostEstimate(
        flops=4 * rows * d_model * d_ff,
        transcendentals=rows * d_ff,
        bytes_accessed=(2 * rows_pad * d_model_pad * x_bytes
                        + 2 * d_model_pad * d_ff_pad * w_bytes
                        + (d_ff_pad + 3 * d_model_pad) * 4),
    )

    out2d = pl.pallas_call(
        kernel,
        out_shape=jax.ShapeDtypeStruct((rows_pad, d_model_pad), x.dtype),
        grid_spec=pltpu.PrefetchScalarGridSpec(
            num_scalar_prefetch=0,
            grid=grid,
            in_specs=[
                pl.BlockSpec((tile_rows, d_model_pad), lambda i: (i, 0)),       # x row tile
                pl.BlockSpec((d_model_pad, d_ff_pad), lambda i: (0, 0),
                             pipeline_mode=resident),                            # W1 (resident)
                pl.BlockSpec((1, d_ff_pad), lambda i: (0, 0),
                             pipeline_mode=resident),                            # b1
                pl.BlockSpec((d_ff_pad, d_model_pad), lambda i: (0, 0),
                             pipeline_mode=resident),                            # W2 (resident)
                pl.BlockSpec((1, d_model_pad), lambda i: (0, 0),
                             pipeline_mode=resident),                            # b2
                pl.BlockSpec((1, d_model_pad), lambda i: (0, 0),
                             pipeline_mode=resident),                            # gamma
                pl.BlockSpec((1, d_model_pad), lambda i: (0, 0),
                             pipeline_mode=resident),                            # beta
            ],
            out_specs=pl.BlockSpec((tile_rows, d_model_pad), lambda i: (i, 0)),
            scratch_shapes=[pltpu.VMEM((tile_rows, d_model_pad), jnp.float32)],  # fc2 acc
        ),
        compiler_params=pltpu.CompilerParams(
            dimension_semantics=("parallel",),
            vmem_limit_bytes=vmem_limit,
        ),
        cost_estimate=cost,
    )(x2d, w1_p, b1_p, w2_p, b2_p, gamma_p, beta_p)

    if rows_pad != rows or d_model_pad != d_model:
        out2d = out2d[:rows, :d_model]
    return out2d.reshape(B, S, d_model)


def poswise_ffn(x, w1, b1, w2, b2, gamma, beta, **kwargs):
    """Convenience one-shot wrapper.  For repeated calls, use
    prepare_ffn_params() once and call poswise_ffn_prepared() directly."""
    params, (d_model, d_ff) = prepare_ffn_params(w1, b1, w2, b2, gamma, beta)
    return poswise_ffn_prepared(x, *params, d_model=d_model, d_ff=d_ff, **kwargs)


def reference_ffn(x, w1, b1, w2, b2, gamma, beta, *,
                  matmul_dtype=jnp.float32, eps=1e-5):
    """Pure-JAX reference. matmul_dtype=bfloat16 mimics the kernel's MXU path
    (operands rounded to bf16, f32 accumulation)."""
    f32 = jnp.float32
    xq = x.astype(matmul_dtype).astype(f32)
    w1q = w1.astype(matmul_dtype).astype(f32)
    w2q = w2.astype(matmul_dtype).astype(f32)
    h = jnp.dot(xq, w1q, precision=lax.Precision.HIGHEST) + b1
    h = h * 0.5 * (1.0 + lax.erf(h * _SQRT2_INV))
    hq = h.astype(matmul_dtype).astype(f32)
    y = jnp.dot(hq, w2q, precision=lax.Precision.HIGHEST) + b2 + x
    mean = jnp.mean(y, axis=-1, keepdims=True)
    var = jnp.mean((y - mean) ** 2, axis=-1, keepdims=True)
    return (y - mean) * lax.rsqrt(var + eps) * gamma + beta


if __name__ == "__main__":
    # Small, deterministic setup.
    batch, seq, d_model, d_ff = 2, 8, 32, 64
    key = jax.random.PRNGKey(0)
    kx, k1, kb1, k2, kb2 = jax.random.split(key, 5)

    x = jax.random.normal(kx, (batch, seq, d_model), dtype=jnp.float32)

    # Deterministic synthetic parameters (Linear weights stored as (in, out)).
    w1 = jax.random.normal(k1, (d_model, d_ff), dtype=jnp.float32) * (1.0 / math.sqrt(d_model))
    b1 = jax.random.normal(kb1, (d_ff,), dtype=jnp.float32) * 0.01
    w2 = jax.random.normal(k2, (d_ff, d_model), dtype=jnp.float32) * (1.0 / math.sqrt(d_ff))
    b2 = jax.random.normal(kb2, (d_model,), dtype=jnp.float32) * 0.01
    gamma = jnp.ones((d_model,), dtype=jnp.float32)   # LayerNorm weight init
    beta = jnp.zeros((d_model,), dtype=jnp.float32)   # LayerNorm bias init

    # Pad/cast the parameters once (hoisted out of the per-call path), then run.
    params, (dm, dff) = prepare_ffn_params(w1, b1, w2, b2, gamma, beta)
    out = poswise_ffn_prepared(x, *params, d_model=dm, d_ff=dff)
    out = jax.block_until_ready(out)
    assert out.shape == (batch, seq, d_model)

    # Check against a reference that uses the same bf16-rounded matmul operands
    # (tight tolerance), and against the pure-f32 reference (bf16 drift only).
    ref_bf16 = reference_ffn(x, w1, b1, w2, b2, gamma, beta, matmul_dtype=jnp.bfloat16)
    assert jnp.allclose(out, ref_bf16, atol=5e-3, rtol=5e-3), (
        f"mismatch vs bf16-matmul reference, max abs err "
        f"{float(jnp.max(jnp.abs(out - ref_bf16)))}")

    ref_f32 = reference_ffn(x, w1, b1, w2, b2, gamma, beta, matmul_dtype=jnp.float32)
    assert jnp.allclose(out, ref_f32, atol=5e-2, rtol=5e-2), (
        f"mismatch vs f32 reference, max abs err "
        f"{float(jnp.max(jnp.abs(out - ref_f32)))}")

    print("KERNEL_OK")
</pallas_src>

<mosaic_0001>
module attributes {stable_mosaic.version = 11 : i64} {
  func.func @ffn_kernel(%arg0: i32, %arg1: memref<8x128xf32, #tpu.memory_space<vmem>>, %arg2: memref<128x128xbf16, #tpu.memory_space<vmem>>, %arg3: memref<1x128xf32, #tpu.memory_space<vmem>>, %arg4: memref<128x128xbf16, #tpu.memory_space<vmem>>, %arg5: memref<1x128xf32, #tpu.memory_space<vmem>>, %arg6: memref<1x128xf32, #tpu.memory_space<vmem>>, %arg7: memref<1x128xf32, #tpu.memory_space<vmem>>, %arg8: memref<8x128xf32, #tpu.memory_space<vmem>>, %arg9: memref<8x128xf32, #tpu.memory_space<vmem>>) attributes {dimension_semantics = [#tpu.dimension_semantics<parallel>], iteration_bounds = array<i64: 2>, scalar_prefetch = 0 : i64, scratch_operands = 1 : i64, tpu.core_type = #tpu.core_type<tc>, window_params = [{transform_indices = @transform_0, window_bounds = array<i64: 8, 128>}, {pipeline_mode = #tpu.pipeline_mode<synchronous>, transform_indices = @transform_1, window_bounds = array<i64: 128, 128>}, {pipeline_mode = #tpu.pipeline_mode<synchronous>, transform_indices = @transform_2, window_bounds = array<i64: 1, 128>}, {pipeline_mode = #tpu.pipeline_mode<synchronous>, transform_indices = @transform_3, window_bounds = array<i64: 128, 128>}, {pipeline_mode = #tpu.pipeline_mode<synchronous>, transform_indices = @transform_4, window_bounds = array<i64: 1, 128>}, {pipeline_mode = #tpu.pipeline_mode<synchronous>, transform_indices = @transform_5, window_bounds = array<i64: 1, 128>}, {pipeline_mode = #tpu.pipeline_mode<synchronous>, transform_indices = @transform_6, window_bounds = array<i64: 1, 128>}, {transform_indices = @transform_7, window_bounds = array<i64: 8, 128>}]} {
    %c0 = arith.constant 0 : index
    %c0_0 = arith.constant 0 : index
    %0 = vector.load %arg1[%c0, %c0_0] : memref<8x128xf32, #tpu.memory_space<vmem>>, vector<8x128xf32>
    %c0_1 = arith.constant 0 : index
    %c0_2 = arith.constant 0 : index
    %1 = vector.load %arg1[%c0_1, %c0_2] : memref<8x128xf32, #tpu.memory_space<vmem>>, vector<8x128xf32>
    %2 = arith.truncf %1 : vector<8x128xf32> to vector<8x128xbf16>
    %cst = arith.constant 0.000000e+00 : f32
    %3 = vector.broadcast %cst : f32 to vector<8x128xf32>
    %c0_3 = arith.constant 0 : index
    %c0_4 = arith.constant 0 : index
    %4 = vector.load %arg9[%c0_3, %c0_4] : memref<8x128xf32, #tpu.memory_space<vmem>>, vector<8x128xf32>
    tpu.vector_store %arg9[%c0_3, %c0_4], %3 {strides = array<i32>} : memref<8x128xf32, #tpu.memory_space<vmem>>, vector<8x128xf32>,
    %c0_i32 = arith.constant 0 : i32
    %c128_i32 = arith.constant 128 : i32
    %5 = arith.muli %c0_i32, %c128_i32 : i32
    %6 = tpu.assume_multiple %5, 128 : i32
    %c0_5 = arith.constant 0 : index
    %7 = arith.index_cast %6 : i32 to index
    %8 = vector.load %arg2[%c0_5, %7] : memref<128x128xbf16, #tpu.memory_space<vmem>>, vector<128x128xbf16>
    %c0_6 = arith.constant 0 : index
    %9 = arith.index_cast %6 : i32 to index
    %10 = vector.load %arg3[%c0_6, %9] : memref<1x128xf32, #tpu.memory_space<vmem>>, vector<1x128xf32>
    %cst_7 = arith.constant dense<0.000000e+00> : vector<8x128xf32>
    %11 = tpu.matmul %2, %8, %cst_7 {dimension_numbers = #tpu.dot_dimension_numbers<[1], [0], [0], [1], [0, 0, 1, 1], [], []>} : vector<8x128xbf16>, vector<128x128xbf16>, vector<8x128xf32> -> vector<8x128xf32>
    %12 = vector.broadcast %10 : vector<1x128xf32> to vector<8x128xf32>
    %13 = arith.addf %11, %12 : vector<8x128xf32>
    %cst_8 = arith.constant 5.000000e-01 : f32
    %14 = vector.broadcast %cst_8 : f32 to vector<8x128xf32>
    %15 = arith.mulf %13, %14 : vector<8x128xf32>
    %cst_9 = arith.constant 0.707106769 : f32
    %16 = vector.broadcast %cst_9 : f32 to vector<8x128xf32>
    %17 = arith.mulf %13, %16 : vector<8x128xf32>
    %18 = math.erf %17 : vector<8x128xf32>
    %cst_10 = arith.constant 1.000000e+00 : f32
    %19 = vector.broadcast %cst_10 : f32 to vector<8x128xf32>
    %20 = arith.addf %19, %18 : vector<8x128xf32>
    %21 = arith.mulf %15, %20 : vector<8x128xf32>
    %22 = arith.index_cast %6 : i32 to index
    %c0_11 = arith.constant 0 : index
    %23 = vector.load %arg4[%22, %c0_11] : memref<128x128xbf16, #tpu.memory_space<vmem>>, vector<128x128xbf16>
    %c0_12 = arith.constant 0 : index
    %c0_13 = arith.constant 0 : index
    %24 = vector.load %arg9[%c0_12, %c0_13] : memref<8x128xf32, #tpu.memory_space<vmem>>, vector<8x128xf32>
    %25 = arith.truncf %21 : vector<8x128xf32> to vector<8x128xbf16>
    %cst_14 = arith.constant dense<0.000000e+00> : vector<8x128xf32>
    %26 = tpu.matmul %25, %23, %cst_14 {dimension_numbers = #tpu.dot_dimension_numbers<[1], [0], [0], [1], [0, 0, 1, 1], [], []>} : vector<8x128xbf16>, vector<128x128xbf16>, vector<8x128xf32> -> vector<8x128xf32>
    %27 = arith.addf %24, %26 : vector<8x128xf32>
    %c0_15 = arith.constant 0 : index
    %c0_16 = arith.constant 0 : index
    %28 = vector.load %arg9[%c0_15, %c0_16] : memref<8x128xf32, #tpu.memory_space<vmem>>, vector<8x128xf32>
    tpu.vector_store %arg9[%c0_15, %c0_16], %27 {strides = array<i32>} : memref<8x128xf32, #tpu.memory_space<vmem>>, vector<8x128xf32>,
    %c1_i32 = arith.constant 1 : i32
    %c0_17 = arith.constant 0 : index
    %c0_18 = arith.constant 0 : index
    %29 = vector.load %arg5[%c0_17, %c0_18] : memref<1x128xf32, #tpu.memory_space<vmem>>, vector<1x128xf32>
    %c0_19 = arith.constant 0 : index
    %c0_20 = arith.constant 0 : index
    %30 = vector.load %arg6[%c0_19, %c0_20] : memref<1x128xf32, #tpu.memory_space<vmem>>, vector<1x128xf32>
    %c0_21 = arith.constant 0 : index
    %c0_22 = arith.constant 0 : index
    %31 = vector.load %arg7[%c0_21, %c0_22] : memref<1x128xf32, #tpu.memory_space<vmem>>, vector<1x128xf32>
    %c0_23 = arith.constant 0 : index
    %c0_24 = arith.constant 0 : index
    %32 = vector.load %arg9[%c0_23, %c0_24] : memref<8x128xf32, #tpu.memory_space<vmem>>, vector<8x128xf32>
    %33 = vector.broadcast %29 : vector<1x128xf32> to vector<8x128xf32>
    %34 = arith.addf %32, %33 : vector<8x128xf32>
    %35 = arith.addf %34, %0 : vector<8x128xf32>
    %cst_25 = arith.constant dense<0.000000e+00> : vector<8xf32>
    %36 = vector.multi_reduction <add>, %35, %cst_25 [1] : vector<8x128xf32> to vector<8xf32>
    %37 = vector.shape_cast %36 : vector<8xf32> to vector<8x1xf32>
    %cst_26 = arith.constant 3.125000e-02 : f32
    %38 = vector.broadcast %cst_26 : f32 to vector<8x1xf32>
    %39 = arith.mulf %37, %38 : vector<8x1xf32>
    %40 = vector.broadcast %39 : vector<8x1xf32> to vector<8x128xf32>
    %41 = arith.subf %35, %40 : vector<8x128xf32>
    %42 = tpu.iota {dimensions = array<i32: 1>} : vector<1x128xi32>
    %c32_i32 = arith.constant 32 : i32
    %43 = vector.broadcast %c32_i32 : i32 to vector<1x128xi32>
    %44 = arith.cmpi slt, %42, %43 : vector<1x128xi32>
    %cst_27 = arith.constant 0.000000e+00 : f32
    %45 = vector.shape_cast %44 : vector<1x128xi1> to vector<1x128xi1>
    %46 = vector.broadcast %45 : vector<1x128xi1> to vector<8x128xi1>
    %47 = vector.broadcast %cst_27 : f32 to vector<8x128xf32>
    %48 = arith.select %46, %41, %47 : vector<8x128xi1>, vector<8x128xf32>
    %49 = arith.mulf %48, %48 : vector<8x128xf32>
    %cst_28 = arith.constant dense<0.000000e+00> : vector<8xf32>
    %50 = vector.multi_reduction <add>, %49, %cst_28 [1] : vector<8x128xf32> to vector<8xf32>
    %51 = vector.shape_cast %50 : vector<8xf32> to vector<8x1xf32>
    %cst_29 = arith.constant 3.125000e-02 : f32
    %52 = vector.broadcast %cst_29 : f32 to vector<8x1xf32>
    %53 = arith.mulf %51, %52 : vector<8x1xf32>
    %cst_30 = arith.constant 9.99999974E-6 : f32
    %54 = vector.broadcast %cst_30 : f32 to vector<8x1xf32>
    %55 = arith.addf %53, %54 : vector<8x1xf32>
    %56 = math.rsqrt %55 : vector<8x1xf32>
    %57 = vector.broadcast %56 : vector<8x1xf32> to vector<8x128xf32>
    %58 = arith.mulf %48, %57 : vector<8x128xf32>
    %59 = vector.broadcast %30 : vector<1x128xf32> to vector<8x128xf32>
    %60 = arith.mulf %58, %59 : vector<8x128xf32>
    %61 = vector.broadcast %31 : vector<1x128xf32> to vector<8x128xf32>
    %62 = arith.addf %60, %61 : vector<8x128xf32>
    %c0_31 = arith.constant 0 : index
    %c0_32 = arith.constant 0 : index
    %63 = vector.load %arg8[%c0_31, %c0_32] : memref<8x128xf32, #tpu.memory_space<vmem>>, vector<8x128xf32>
    tpu.vector_store %arg8[%c0_31, %c0_32], %62 {strides = array<i32>} : memref<8x128xf32, #tpu.memory_space<vmem>>, vector<8x128xf32>,
    return
  }
  func.func @transform_0(%arg0: i32) -> (i32, i32) {
    %c0_i32 = arith.constant 0 : i32
    %c0_i32_0 = arith.constant 0 : i32
    return %arg0, %c0_i32 : i32, i32
  }
  func.func @transform_1(%arg0: i32) -> (i32, i32) {
    %c0_i32 = arith.constant 0 : i32
    %c0_i32_0 = arith.constant 0 : i32
    %c0_i32_1 = arith.constant 0 : i32
    return %c0_i32, %c0_i32_0 : i32, i32
  }
  func.func @transform_2(%arg0: i32) -> (i32, i32) {
    %c0_i32 = arith.constant 0 : i32
    %c0_i32_0 = arith.constant 0 : i32
    %c0_i32_1 = arith.constant 0 : i32
    return %c0_i32, %c0_i32_0 : i32, i32
  }
  func.func @transform_3(%arg0: i32) -> (i32, i32) {
    %c0_i32 = arith.constant 0 : i32
    %c0_i32_0 = arith.constant 0 : i32
    %c0_i32_1 = arith.constant 0 : i32
    return %c0_i32, %c0_i32_0 : i32, i32
  }
  func.func @transform_4(%arg0: i32) -> (i32, i32) {
    %c0_i32 = arith.constant 0 : i32
    %c0_i32_0 = arith.constant 0 : i32
    %c0_i32_1 = arith.constant 0 : i32
    return %c0_i32, %c0_i32_0 : i32, i32
  }
  func.func @transform_5(%arg0: i32) -> (i32, i32) {
    %c0_i32 = arith.constant 0 : i32
    %c0_i32_0 = arith.constant 0 : i32
    %c0_i32_1 = arith.constant 0 : i32
    return %c0_i32, %c0_i32_0 : i32, i32
  }
  func.func @transform_6(%arg0: i32) -> (i32, i32) {
    %c0_i32 = arith.constant 0 : i32
    %c0_i32_0 = arith.constant 0 : i32
    %c0_i32_1 = arith.constant 0 : i32
    return %c0_i32, %c0_i32_0 : i32, i32
  }
  func.func @transform_7(%arg0: i32) -> (i32, i32) {
    %c0_i32 = arith.constant 0 : i32
    %c0_i32_0 = arith.constant 0 : i32
    return %arg0, %c0_i32 : i32, i32
  }
}

</mosaic_0001>

<llo_original>
// kernel: poswise_ffn_prepared.1
$region0: #{poswise_ffn_prepared.1}
  #allocation0 [shape = 'u32[]', space=smem, size = 0x4, offset = 0x4, fixed_abs, tag = 'smem constant byte address 0x4 - core index']
  #allocation1 [shape = 'u32[144,128]{1,0:T(1,128)}', space=vmem, size = 0x12000, scoped, tag = 'internal scratch']
  #allocation2 [shape = 'f32[8,128]{1,0:T(8,128)}', space=vmem, size = 0x1000, scoped, tag = 'scratch operand']
  %s0 = inlined_call_operand.hbm [shape: f32[16,128], index: 0, kind: input, shape index: {}]
  %s1 = inlined_call_operand.hbm [shape: bf16[128,128], index: 1, kind: input, shape index: {}]
  %s2 = inlined_call_operand.hbm [shape: f32[1,128], index: 2, kind: input, shape index: {}]
  %s3 = inlined_call_operand.hbm [shape: bf16[128,128], index: 3, kind: input, shape index: {}]
  %s4 = inlined_call_operand.hbm [shape: f32[1,128], index: 4, kind: input, shape index: {}]
  %s5 = inlined_call_operand.hbm [shape: f32[1,128], index: 5, kind: input, shape index: {}]
  %s6 = inlined_call_operand.hbm [shape: f32[1,128], index: 6, kind: input, shape index: {}]
  %s7 = inlined_call_operand.hbm [shape: f32[16,128], index: 7, kind: output, shape index: {}]
  %s8 = sld [smem:[#allocation0]]
  $region89: #{poswise_ffn_prepared.1} parent=0
    _
  %s10 = ssub.s32 1, %s8
  %s11 = scalar_select 0, %s10, %s8
  $region1: #{poswise_ffn_prepared.1} parent=0
    #allocation3 [shape = 'u8[8192]{0}', space=vmem, size = 0x2000, scoped, tag = 'input window, operand 0']
    #allocation4 [shape = 's32[2]{0}', space=sflag, size = 0x8, scoped, tag = 'scoped memory for poswise_ffn_prepared.1']
    #allocation5 [shape = 's32[2]{0}', space=sflag, size = 0x8, scoped, tag = 'scoped memory for poswise_ffn_prepared.1']
    #allocation6 [shape = 'u8[32768]{0}', space=vmem, size = 0x8000, scoped, tag = 'input window, operand 1, single buffered']
    #allocation7 [shape = 's32[1]{0}', space=sflag, size = 0x4, scoped, tag = 'scoped memory for poswise_ffn_prepared.1']
    #allocation8 [shape = 'u8[512]{0}', space=vmem, size = 0x400, scoped, tag = 'input window, operand 2, single buffered']
    #allocation9 [shape = 'u8[32768]{0}', space=vmem, size = 0x8000, scoped, tag = 'input window, operand 3, single buffered']
    #allocation10 [shape = 's32[1]{0}', space=sflag, size = 0x4, scoped, tag = 'scoped memory for poswise_ffn_prepared.1']
    #allocation11 [shape = 'u8[512]{0}', space=vmem, size = 0x400, scoped, tag = 'input window, operand 4, single buffered']
    #allocation12 [shape = 'u8[512]{0}', space=vmem, size = 0x400, scoped, tag = 'input window, operand 5, single buffered']
    #allocation13 [shape = 's32[1]{0}', space=sflag, size = 0x4, scoped, tag = 'scoped memory for poswise_ffn_prepared.1']
    #allocation14 [shape = 'u8[512]{0}', space=vmem, size = 0x400, scoped, tag = 'input window, operand 6, single buffered']
    #allocation15 [shape = 'u8[8192]{0}', space=vmem, size = 0x2000, scoped, tag = 'output window, operand 0']
    %12 = vsyncpa [#allocation4], 0
    %s13 = scalar_lea.sflag [#allocation4], 1
    %14 = vsyncpa %s13, 0
    %15 = vsyncpa [#allocation7], 0
    %16 = vsyncpa [#allocation10], 0
    %17 = vsyncpa [#allocation13], 0
    %18 = vsyncpa [#allocation5], 0
    %s19 = scalar_lea.sflag [#allocation5], 1
    %20 = vsyncpa %s19, 0
    loop: start=0, step=1, limit=4
    $region2: #{poswise_ffn_prepared.1} parent=1 // loop_pre_header
      _
    $region3: #{poswise_ffn_prepared.1} parent=1 // loop_header
      %s22 = sphi 0, %s26
      %p23 = scmp.ge.s32.totalorder %s22, 4
      %s32 = sphi 0, %s34
      %s35 = sphi 0, %s32
      %s36 = sphi 0, %s35
      %s52 = sphi 0, %s36
      %s56 = sphi 0, %s56
      %s58 = sphi 0, %s56
      %s59 = sphi 0, %s58
      %s73 = sphi 0, %s59
      %s77 = sphi 0, %s77
      %s79 = sphi 0, %s77
      %s80 = sphi 0, %s79
      %s94 = sphi 0, %s80
      %s98 = sphi 0, %s98
      %s100 = sphi 0, %s98
      %s101 = sphi 0, %s100
      %s115 = sphi 0, %s101
      %s119 = sphi 0, %s119
      %s121 = sphi 0, %s119
      %s122 = sphi 0, %s121
      %s136 = sphi 0, %s122
      %s140 = sphi 0, %s140
      %s142 = sphi 0, %s140
      %s143 = sphi 0, %s142
      %s157 = sphi 0, %s143
      %s161 = sphi 0, %s161
      %s163 = sphi 0, %s161
      %s164 = sphi 0, %s163
      %s178 = sphi 0, %s164
      %s184 = sphi 0, %s186
      %s187 = sphi 0, %s184
      %s188 = sphi 0, %s187
      %s204 = sphi 0, %s188
    $region4: #{poswise_ffn_prepared.1} parent=1 // loop_header_branch
      %25 = sbr.rel (%p23) target = $region8
    $region5: #{poswise_ffn_prepared.1} parent=1 // loop_body
      %s27 = ssub.s32 %s22, 1
      %s28 = ssub.s32 %s22, 2
      %s29 = sadd.s32 %s22, 1
      %s30 = ssub.s32 %s22, %s29
      %p31 = scmp.eq.s32.totalorder %s30, 0
      %s33 = sadd.s32 %s32, 1
      %s34 = scalar_select %p31, %s32, %s33
      %p37 = pneg %p31
      %p38 = scmp.eq.s32.totalorder %s22, 1
      %p39 = por %p37, %p38
      %p40 = scmp.ne.s32.totalorder %s32, %s35
      %p41 = scmp.eq.s32.totalorder %s22, 0
      %p42 = por %p40, %p41
      %p43 = scmp.ne.s32.totalorder %s32, %s35
      %p44 = scmp.eq.s32.totalorder %s27, 1
      %p45 = por %p43, %p44
      %p46 = scmp.ne.s32.totalorder %s35, %s36
      %p47 = scmp.eq.s32.totalorder %s27, 0
      %p48 = por %p46, %p47
      %p49 = scmp.ne.s32.totalorder %s35, %s36
      %p50 = scmp.eq.s32.totalorder %s28, 1
      %p51 = por %p49, %p50
      %p53 = scmp.ne.s32.totalorder %s36, %s52
      %p54 = scmp.eq.s32.totalorder %s28, 0
      %p55 = por %p53, %p54
      %s57 = sadd.s32 %s56, 1
      %p60 = scmp.eq.s32.totalorder %s22, 1
      %p61 = scmp.ne.s32.totalorder %s56, %s58
      %p62 = scmp.eq.s32.totalorder %s22, 0
      %p63 = por %p61, %p62
      %p64 = scmp.ne.s32.totalorder %s56, %s58
      %p65 = scmp.eq.s32.totalorder %s27, 1
      %p66 = por %p64, %p65
      %p67 = scmp.ne.s32.totalorder %s58, %s59
      %p68 = scmp.eq.s32.totalorder %s27, 0
      %p69 = por %p67, %p68
      %p70 = scmp.ne.s32.totalorder %s58, %s59
      %p71 = scmp.eq.s32.totalorder %s28, 1
      %p72 = por %p70, %p71
      %p74 = scmp.ne.s32.totalorder %s59, %s73
      %p75 = scmp.eq.s32.totalorder %s28, 0
      %p76 = por %p74, %p75
      %s78 = sadd.s32 %s77, 1
      %p81 = scmp.eq.s32.totalorder %s22, 1
      %p82 = scmp.ne.s32.totalorder %s77, %s79
      %p83 = scmp.eq.s32.totalorder %s22, 0
      %p84 = por %p82, %p83
      %p85 = scmp.ne.s32.totalorder %s77, %s79
      %p86 = scmp.eq.s32.totalorder %s27, 1
      %p87 = por %p85, %p86
      %p88 = scmp.ne.s32.totalorder %s79, %s80
      %p89 = scmp.eq.s32.totalorder %s27, 0
      %p90 = por %p88, %p89
      %p91 = scmp.ne.s32.totalorder %s79, %s80
      %p92 = scmp.eq.s32.totalorder %s28, 1
      %p93 = por %p91, %p92
      %p95 = scmp.ne.s32.totalorder %s80, %s94
      %p96 = scmp.eq.s32.totalorder %s28, 0
      %p97 = por %p95, %p96
      %s99 = sadd.s32 %s98, 1
      %p102 = scmp.eq.s32.totalorder %s22, 1
      %p103 = scmp.ne.s32.totalorder %s98, %s100
      %p104 = scmp.eq.s32.totalorder %s22, 0
      %p105 = por %p103, %p104
      %p106 = scmp.ne.s32.totalorder %s98, %s100
      %p107 = scmp.eq.s32.totalorder %s27, 1
      %p108 = por %p106, %p107
      %p109 = scmp.ne.s32.totalorder %s100, %s101
      %p110 = scmp.eq.s32.totalorder %s27, 0
      %p111 = por %p109, %p110
      %p112 = scmp.ne.s32.totalorder %s100, %s101
      %p113 = scmp.eq.s32.totalorder %s28, 1
      %p114 = por %p112, %p113
      %p116 = scmp.ne.s32.totalorder %s101, %s115
      %p117 = scmp.eq.s32.totalorder %s28, 0
      %p118 = por %p116, %p117
      %s120 = sadd.s32 %s119, 1
      %p123 = scmp.eq.s32.totalorder %s22, 1
      %p124 = scmp.ne.s32.totalorder %s119, %s121
      %p125 = scmp.eq.s32.totalorder %s22, 0
      %p126 = por %p124, %p125
      %p127 = scmp.ne.s32.totalorder %s119, %s121
      %p128 = scmp.eq.s32.totalorder %s27, 1
      %p129 = por %p127, %p128
      %p130 = scmp.ne.s32.totalorder %s121, %s122
      %p131 = scmp.eq.s32.totalorder %s27, 0
      %p132 = por %p130, %p131
      %p133 = scmp.ne.s32.totalorder %s121, %s122
      %p134 = scmp.eq.s32.totalorder %s28, 1
      %p135 = por %p133, %p134
      %p137 = scmp.ne.s32.totalorder %s122, %s136
      %p138 = scmp.eq.s32.totalorder %s28, 0
      %p139 = por %p137, %p138
      %s141 = sadd.s32 %s140, 1
      %p144 = scmp.eq.s32.totalorder %s22, 1
      %p145 = scmp.ne.s32.totalorder %s140, %s142
      %p146 = scmp.eq.s32.totalorder %s22, 0
      %p147 = por %p145, %p146
      %p148 = scmp.ne.s32.totalorder %s140, %s142
      %p149 = scmp.eq.s32.totalorder %s27, 1
      %p150 = por %p148, %p149
      %p151 = scmp.ne.s32.totalorder %s142, %s143
      %p152 = scmp.eq.s32.totalorder %s27, 0
      %p153 = por %p151, %p152
      %p154 = scmp.ne.s32.totalorder %s142, %s143
      %p155 = scmp.eq.s32.totalorder %s28, 1
      %p156 = por %p154, %p155
      %p158 = scmp.ne.s32.totalorder %s143, %s157
      %p159 = scmp.eq.s32.totalorder %s28, 0
      %p160 = por %p158, %p159
      %s162 = sadd.s32 %s161, 1
      %p165 = scmp.eq.s32.totalorder %s22, 1
      %p166 = scmp.ne.s32.totalorder %s161, %s163
      %p167 = scmp.eq.s32.totalorder %s22, 0
      %p168 = por %p166, %p167
      %p169 = scmp.ne.s32.totalorder %s161, %s163
      %p170 = scmp.eq.s32.totalorder %s27, 1
      %p171 = por %p169, %p170
      %p172 = scmp.ne.s32.totalorder %s163, %s164
      %p173 = scmp.eq.s32.totalorder %s27, 0
      %p174 = por %p172, %p173
      %p175 = scmp.ne.s32.totalorder %s163, %s164
      %p176 = scmp.eq.s32.totalorder %s28, 1
      %p177 = por %p175, %p176
      %p179 = scmp.ne.s32.totalorder %s164, %s178
      %p180 = scmp.eq.s32.totalorder %s28, 0
      %p181 = por %p179, %p180
      %s182 = ssub.s32 %s22, %s29
      %p183 = scmp.eq.s32.totalorder %s182, 0
      %s185 = sadd.s32 %s184, 1
      %s186 = scalar_select %p183, %s184, %s185
      %p189 = pneg %p183
      %p190 = scmp.eq.s32.totalorder %s22, 1
      %p191 = por %p189, %p190
      %p192 = scmp.ne.s32.totalorder %s184, %s187
      %p193 = scmp.eq.s32.totalorder %s22, 0
      %p194 = por %p192, %p193
      %p195 = scmp.ne.s32.totalorder %s184, %s187
      %p196 = scmp.eq.s32.totalorder %s27, 1
      %p197 = por %p195, %p196
      %p198 = scmp.ne.s32.totalorder %s187, %s188
      %p199 = scmp.eq.s32.totalorder %s27, 0
      %p200 = por %p198, %p199
      %p201 = scmp.ne.s32.totalorder %s187, %s188
      %p202 = scmp.eq.s32.totalorder %s28, 1
      %p203 = por %p201, %p202
      %p205 = scmp.ne.s32.totalorder %s188, %s204
      %p206 = scmp.eq.s32.totalorder %s28, 0
      %p207 = por %p205, %p206
      %p208 = scmp.le.s32.totalorder 1, %s22
      %p209 = scmp.lt.s32.totalorder %s22, 3
      %p210 = pnand %p208, %p209
      %p211 = pneg %p210
      // Predicated region
      $region9: #{poswise_ffn_prepared.1} parent=5 // pred_check
        _
      $region10: #{poswise_ffn_prepared.1} parent=5 // pred_check_branch
        %213 = sbr.rel (%p210) target = $region12
      $region11: #{poswise_ffn_prepared.1} parent=5 // pred_region
        %s214 = ssub.s32 %s22, 1
        // Predicated region
        $region13: #{poswise_ffn_prepared.1} parent=11 // pred_check
          %p215 = pneg %p69
        $region14: #{poswise_ffn_prepared.1} parent=11 // pred_check_branch
          %217 = sbr.rel (%p215) target = $region16
        $region15: #{poswise_ffn_prepared.1} parent=11 // pred_region
          %s219 = ssub.s32 1024, 1024
          %220 = vsyncadd [#allocation7], %s219
          %s221 = sshll.u32 [#allocation6], 4
          %s222 = int_to_ptr.vmem [resolvable:$true] %s221
          %227 = dma.hbm_to_vmem [thread:$0]  %s1, 1024, %s222, [#allocation7], 64, 64, 4
        $region16: #{poswise_ffn_prepared.1} parent=11 // pred_fallthru
          _
        // Predicated region
        $region17: #{poswise_ffn_prepared.1} parent=11 // pred_check
          %p228 = pneg %p90
        $region18: #{poswise_ffn_prepared.1} parent=11 // pred_check_branch
          %230 = sbr.rel (%p228) target = $region20
        $region19: #{poswise_ffn_prepared.1} parent=11 // pred_region
          %s232 = ssub.s32 16, 16
          %233 = vsyncadd [#allocation7], %s232
          %s235 = sshll.u32 [#allocation8], 4
          %s236 = int_to_ptr.vmem [resolvable:$true] %s235
          %238 = dma.hbm_to_vmem [thread:$0]  %s2, 16, %s236, [#allocation7]
        $region20: #{poswise_ffn_prepared.1} parent=11 // pred_fallthru
          _
        // Predicated region
        $region21: #{poswise_ffn_prepared.1} parent=11 // pred_check
          %p239 = pneg %p111
        $region22: #{poswise_ffn_prepared.1} parent=11 // pred_check_branch
          %241 = sbr.rel (%p239) target = $region24
        $region23: #{poswise_ffn_prepared.1} parent=11 // pred_region
          %s243 = ssub.s32 1024, 1024
          %244 = vsyncadd [#allocation10], %s243
          %s245 = sshll.u32 [#allocation9], 4
          %s246 = int_to_ptr.vmem [resolvable:$true] %s245
          %251 = dma.hbm_to_vmem [thread:$0]  %s3, 1024, %s246, [#allocation10], 64, 64, 4
        $region24: #{poswise_ffn_prepared.1} parent=11 // pred_fallthru
          _
        // Predicated region
        $region25: #{poswise_ffn_prepared.1} parent=11 // pred_check
          %p252 = pneg %p132
        $region26: #{poswise_ffn_prepared.1} parent=11 // pred_check_branch
          %254 = sbr.rel (%p252) target = $region28
        $region27: #{poswise_ffn_prepared.1} parent=11 // pred_region
          %s256 = ssub.s32 16, 16
          %257 = vsyncadd [#allocation10], %s256
          %s259 = sshll.u32 [#allocation11], 4
          %s260 = int_to_ptr.vmem [resolvable:$true] %s259
          %262 = dma.hbm_to_vmem [thread:$0]  %s4, 16, %s260, [#allocation10]
        $region28: #{poswise_ffn_prepared.1} parent=11 // pred_fallthru
          _
        // Predicated region
        $region29: #{poswise_ffn_prepared.1} parent=11 // pred_check
          %p263 = pneg %p153
        $region30: #{poswise_ffn_prepared.1} parent=11 // pred_check_branch
          %265 = sbr.rel (%p263) target = $region32
        $region31: #{poswise_ffn_prepared.1} parent=11 // pred_region
          %s267 = ssub.s32 16, 16
          %268 = vsyncadd [#allocation13], %s267
          %s270 = sshll.u32 [#allocation12], 4
          %s271 = int_to_ptr.vmem [resolvable:$true] %s270
          %273 = dma.hbm_to_vmem [thread:$0]  %s5, 16, %s271, [#allocation13]
        $region32: #{poswise_ffn_prepared.1} parent=11 // pred_fallthru
          _
        // Predicated region
        $region33: #{poswise_ffn_prepared.1} parent=11 // pred_check
          %p274 = pneg %p174
        $region34: #{poswise_ffn_prepared.1} parent=11 // pred_check_branch
          %276 = sbr.rel (%p274) target = $region36
        $region35: #{poswise_ffn_prepared.1} parent=11 // pred_region
          %s278 = ssub.s32 16, 16
          %279 = vsyncadd [#allocation13], %s278
          %s281 = sshll.u32 [#allocation14], 4
          %s282 = int_to_ptr.vmem [resolvable:$true] %s281
          %284 = dma.hbm_to_vmem [thread:$0]  %s6, 16, %s282, [#allocation13]
        $region36: #{poswise_ffn_prepared.1} parent=11 // pred_fallthru
          _
      $region12: #{poswise_ffn_prepared.1} parent=5 // pred_fallthru
        _
      %p285 = scmp.lt.s32.totalorder %s22, 2
      // Predicated region
      $region37: #{poswise_ffn_prepared.1} parent=5 // pred_check
        %p286 = pneg %p285
      $region38: #{poswise_ffn_prepared.1} parent=5 // pred_check_branch
        %288 = sbr.rel (%p286) target = $region40
      $region39: #{poswise_ffn_prepared.1} parent=5 // pred_region
        // Predicated region
        $region41: #{poswise_ffn_prepared.1} parent=39 // pred_check
          %p289 = pneg %p42
        $region42: #{poswise_ffn_prepared.1} parent=39 // pred_check_branch
          %291 = sbr.rel (%p289) target = $region44
        $region43: #{poswise_ffn_prepared.1} parent=39 // pred_region
          %s292 = sand.u32 %s32, 1
          %s293 = scalar_lea.sflag [#allocation4], %s292
          %s294 = sand.u32 %s32, 1
          %s295 = smul.addr %s294, 8
          %s296 = scalar_lea.vmem [#allocation3], %s295
          %s298 = ssub.s32 128, 128
          %299 = vsyncadd %s293, %s298
          %s300 = smul.addr %s22, 128
          %s301 = scalar_lea.hbm %s0, %s300
          %s303 = sshll.u32 %s296, 4
          %s304 = int_to_ptr.vmem [resolvable:$true] %s303
          %306 = dma.hbm_to_vmem [thread:$0]  %s301, 128, %s304, %s293
        $region44: #{poswise_ffn_prepared.1} parent=39 // pred_fallthru
          _
      $region40: #{poswise_ffn_prepared.1} parent=5 // pred_fallthru
        _
      %p307 = scmp.le.s32.totalorder 1, %s22
      %p308 = scmp.lt.s32.totalorder %s22, 3
      %p309 = pnand %p307, %p308
      %p310 = pneg %p309
      // Predicated region
      $region45: #{poswise_ffn_prepared.1} parent=5 // pred_check
        _
      $region46: #{poswise_ffn_prepared.1} parent=5 // pred_check_branch
        %312 = sbr.rel (%p309) target = $region48
      $region47: #{poswise_ffn_prepared.1} parent=5 // pred_region
        %s313 = ssub.s32 %s22, 1
        %s314 = sand.u32 %s35, 1
        %s315 = scalar_lea.sflag [#allocation4], %s314
        %s316 = sand.u32 %s35, 1
        %s317 = smul.addr %s316, 8
        %s318 = scalar_lea.vmem [#allocation3], %s317
        // Predicated region
        $region49: #{poswise_ffn_prepared.1} parent=47 // pred_check
          %p319 = pneg %p48
        $region50: #{poswise_ffn_prepared.1} parent=47 // pred_check_branch
          %321 = sbr.rel (%p319) target = $region52
        $region51: #{poswise_ffn_prepared.1} parent=47 // pred_region
          %322 = dma.done %s315, 128
        $region52: #{poswise_ffn_prepared.1} parent=47 // pred_fallthru
          _
        // Predicated region
        $region53: #{poswise_ffn_prepared.1} parent=47 // pred_check
          %p323 = pneg %p69
        $region54: #{poswise_ffn_prepared.1} parent=47 // pred_check_branch
          %325 = sbr.rel (%p323) target = $region56
        $region55: #{poswise_ffn_prepared.1} parent=47 // pred_region
          %326 = dma.done [#allocation7], 1024
        $region56: #{poswise_ffn_prepared.1} parent=47 // pred_fallthru
          _
        // Predicated region
        $region57: #{poswise_ffn_prepared.1} parent=47 // pred_check
          %p327 = pneg %p90
        $region58: #{poswise_ffn_prepared.1} parent=47 // pred_check_branch
          %329 = sbr.rel (%p327) target = $region60
        $region59: #{poswise_ffn_prepared.1} parent=47 // pred_region
          %330 = dma.done [#allocation7], 16
        $region60: #{poswise_ffn_prepared.1} parent=47 // pred_fallthru
          _
        // Predicated region
        $region61: #{poswise_ffn_prepared.1} parent=47 // pred_check
          %p331 = pneg %p111
        $region62: #{poswise_ffn_prepared.1} parent=47 // pred_check_branch
          %333 = sbr.rel (%p331) target = $region64
        $region63: #{poswise_ffn_prepared.1} parent=47 // pred_region
          %334 = dma.done [#allocation10], 1024
        $region64: #{poswise_ffn_prepared.1} parent=47 // pred_fallthru
          _
        // Predicated region
        $region65: #{poswise_ffn_prepared.1} parent=47 // pred_check
          %p335 = pneg %p132
        $region66: #{poswise_ffn_prepared.1} parent=47 // pred_check_branch
          %337 = sbr.rel (%p335) target = $region68
        $region67: #{poswise_ffn_prepared.1} parent=47 // pred_region
          %338 = dma.done [#allocation10], 16
        $region68: #{poswise_ffn_prepared.1} parent=47 // pred_fallthru
          _
        // Predicated region
        $region69: #{poswise_ffn_prepared.1} parent=47 // pred_check
          %p339 = pneg %p153
        $region70: #{poswise_ffn_prepared.1} parent=47 // pred_check_branch
          %341 = sbr.rel (%p339) target = $region72
        $region71: #{poswise_ffn_prepared.1} parent=47 // pred_region
          %342 = dma.done [#allocation13], 16
        $region72: #{poswise_ffn_prepared.1} parent=47 // pred_fallthru
          _
        // Predicated region
        $region73: #{poswise_ffn_prepared.1} parent=47 // pred_check
          %p343 = pneg %p174
        $region74: #{poswise_ffn_prepared.1} parent=47 // pred_check_branch
          %345 = sbr.rel (%p343) target = $region76
        $region75: #{poswise_ffn_prepared.1} parent=47 // pred_region
          %346 = dma.done [#allocation13], 16
        $region76: #{poswise_ffn_prepared.1} parent=47 // pred_fallthru
          _
        %s347 = sand.u32 %s35, 1
        %s348 = scalar_lea.sflag [#allocation4], %s347
        %s349 = sand.u32 %s35, 1
        %s350 = smul.addr %s349, 8
        %s351 = scalar_lea.vmem [#allocation3], %s350
        %p352 = pneg %p48
        %p353 = pneg %p45
        %p354 = pneg %p69
        %p355 = pneg %p66
        %p356 = pneg %p90
        %p357 = pneg %p87
        %p358 = pneg %p111
        %p359 = pneg %p108
        %p360 = pneg %p132
        %p361 = pneg %p129
        %p362 = pneg %p153
        %p363 = pneg %p150
        %p364 = pneg %p174
        %p365 = pneg %p171
        %p366 = pneg %p200
        %p367 = pneg %p197
        %s368 = sand.u32 %s187, 1
        %s369 = scalar_lea.sflag [#allocation5], %s368
        %s370 = sand.u32 %s187, 1
        %s371 = smul.addr %s370, 8
        %s372 = scalar_lea.vmem [#allocation15], %s371
        %v374 = vld [vmem:[%s318] sm:$0xff]
        %v375 = vpack.c.bf16 %v374, %v374
        %376 = vst [vmem:[#allocation2] sm:$0xff] 0.0
        %v377 = vld [vmem:[#allocation6] sm:$0xf]
        %v378 = vld [vmem:[#allocation6 + $0x4] sm:$0xf]
        %v379 = vld [vmem:[#allocation6 + $0x8] sm:$0xf]
        %v380 = vld [vmem:[#allocation6 + $0xc] sm:$0xf]
        %v381 = vld [vmem:[#allocation6 + $0x10] sm:$0xf]
        %v382 = vld [vmem:[#allocation6 + $0x14] sm:$0xf]
        %v383 = vld [vmem:[#allocation6 + $0x18] sm:$0xf]
        %v384 = vld [vmem:[#allocation6 + $0x1c] sm:$0xf]
        %v385 = vld [vmem:[#allocation6 + $0x20] sm:$0xf]
        %v386 = vld [vmem:[#allocation6 + $0x24] sm:$0xf]
        %v387 = vld [vmem:[#allocation6 + $0x28] sm:$0xf]
        %v388 = vld [vmem:[#allocation6 + $0x2c] sm:$0xf]
        %v389 = vld [vmem:[#allocation6 + $0x30] sm:$0xf]
        %v390 = vld [vmem:[#allocation6 + $0x34] sm:$0xf]
        %v391 = vld [vmem:[#allocation6 + $0x38] sm:$0xf]
        %v392 = vld [vmem:[#allocation6 + $0x3c] sm:$0xf]
        %v393 = vld [vmem:[#allocation8] sm:$0x1]
        %v395 = vlaneseq
        %v396 = vshrl.u32 %v395, 7
        %v397 = vsub.s32 0, %v396
        %v398 = vrot.slane %v393, %v397
        %v416 = vunpack.c.l.b16 %v377
        %v417 = vunpack.c.l.b16 %v378
        %v418 = vunpack.c.l.b16 %v379
        %v419 = vunpack.c.l.b16 %v380
        %v420 = vunpack.c.l.b16 %v381
        %v421 = vunpack.c.l.b16 %v382
        %v422 = vunpack.c.l.b16 %v383
        %v423 = vunpack.c.l.b16 %v384
        %v424 = vunpack.c.l.b16 %v385
        %v425 = vunpack.c.l.b16 %v386
        %v426 = vunpack.c.l.b16 %v387
        %v427 = vunpack.c.l.b16 %v388
        %v428 = vunpack.c.l.b16 %v389
        %v429 = vunpack.c.l.b16 %v390
        %v430 = vunpack.c.l.b16 %v391
        %v431 = vunpack.c.l.b16 %v392
        %v432 = vpack.c.b16 %v417, %v416
        %v433 = vpack.c.b16 %v419, %v418
        %v434 = vpack.c.b16 %v421, %v420
        %v435 = vpack.c.b16 %v423, %v422
        %v436 = vpack.c.b16 %v425, %v424
        %v437 = vpack.c.b16 %v427, %v426
        %v438 = vpack.c.b16 %v429, %v428
        %v439 = vpack.c.b16 %v431, %v430
        %448 = vmatprep.subr.bf16.mxu0 0
        %449 = vmatpush1.bf16.msra.mxu0 %v432
        %450 = vmatprep.subr.bf16.mxu0 0
        %451 = vmatpush1.bf16.msra.mxu0 %v433
        %452 = vmatprep.subr.bf16.mxu0 0
        %453 = vmatpush1.bf16.msra.mxu0 %v434
        %454 = vmatprep.subr.bf16.mxu0 0
        %455 = vmatpush1.bf16.msra.mxu0 %v435
        %456 = vmatprep.subr.bf16.mxu0 0
        %457 = vmatpush1.bf16.msra.mxu0 %v436
        %458 = vmatprep.subr.bf16.mxu0 0
        %459 = vmatpush1.bf16.msra.mxu0 %v437
        %460 = vmatprep.subr.bf16.mxu0 0
        %461 = vmatpush1.bf16.msra.mxu0 %v438
        %462 = vmatprep.subr.bf16.mxu0 0
        %463 = vmatpush1.bf16.msra.mxu0 %v439
        %464 = vmatprep.subr.bf16.mxu0 0
        %465 = vmatpush1.bf16.msra.mxu0 0
        %466 = vmatprep.subr.bf16.mxu0 0
        %467 = vmatpush1.bf16.msra.mxu0 0
        %468 = vmatprep.subr.bf16.mxu0 0
        %469 = vmatpush1.bf16.msra.mxu0 0
        %470 = vmatprep.subr.bf16.mxu0 0
        %471 = vmatpush1.bf16.msra.mxu0 0
        %472 = vmatprep.subr.bf16.mxu0 0
        %473 = vmatpush1.bf16.msra.mxu0 0
        %474 = vmatprep.subr.bf16.mxu0 0
        %475 = vmatpush1.bf16.msra.mxu0 0
        %476 = vmatprep.subr.bf16.mxu0 0
        %477 = vmatpush1.bf16.msra.mxu0 0
        %478 = vmatprep.subr.bf16.mxu0 0
        %479 = vmatpush1.bf16.msra.mxu0 0
        %480 = vmatprep.mubr.bf16.mxu0 0
        %481 = vmatmul.mubr.bf16.gmra.mrb[0].mxu0 %v375
        %v482 = vpop.f32.mrb[0].mxu0
        %v483 = vadd.f32 %v398, %v482
        %v484 = vpop.f32.mrb[0].mxu0
        %v485 = vpop.f32.mrb[0].mxu0
        %v486 = vpop.f32.mrb[0].mxu0
        %487 = vdwg.mxu0
        %v488 = vmul.f32 %v483, 0.5
        %v489 = vmul.f32 %v483, 0.70710677
        %v490 = verf.f32.pop %v489
        %v491 = vadd.f32 %v490, 1.0
        %v492 = vmul.f32 %v488, %v491
        %v493 = vld [vmem:[#allocation9] sm:$0xf]
        %v494 = vld [vmem:[#allocation9 + $0x4] sm:$0xf]
        %v495 = vld [vmem:[#allocation9 + $0x8] sm:$0xf]
        %v496 = vld [vmem:[#allocation9 + $0xc] sm:$0xf]
        %v497 = vld [vmem:[#allocation9 + $0x10] sm:$0xf]
        %v498 = vld [vmem:[#allocation9 + $0x14] sm:$0xf]
        %v499 = vld [vmem:[#allocation9 + $0x18] sm:$0xf]
        %v500 = vld [vmem:[#allocation9 + $0x1c] sm:$0xf]
        %v501 = vld [vmem:[#allocation9 + $0x20] sm:$0xf]
        %v502 = vld [vmem:[#allocation9 + $0x24] sm:$0xf]
        %v503 = vld [vmem:[#allocation9 + $0x28] sm:$0xf]
        %v504 = vld [vmem:[#allocation9 + $0x2c] sm:$0xf]
        %v505 = vld [vmem:[#allocation9 + $0x30] sm:$0xf]
        %v506 = vld [vmem:[#allocation9 + $0x34] sm:$0xf]
        %v507 = vld [vmem:[#allocation9 + $0x38] sm:$0xf]
        %v508 = vld [vmem:[#allocation9 + $0x3c] sm:$0xf]
        %v509 = vld [vmem:[#allocation2] sm:$0xff]
        %v510 = vpack.c.bf16 %v492, %v492
        %v527 = vunpack.c.l.b16 %v493
        %v528 = vunpack.c.l.b16 %v494
        %v529 = vunpack.c.l.b16 %v495
        %v530 = vunpack.c.l.b16 %v496
        %v531 = vunpack.c.l.b16 %v497
        %v532 = vunpack.c.l.b16 %v498
        %v533 = vunpack.c.l.b16 %v499
        %v534 = vunpack.c.l.b16 %v500
        %v535 = vunpack.c.l.b16 %v501
        %v536 = vunpack.c.l.b16 %v502
        %v537 = vunpack.c.l.b16 %v503
        %v538 = vunpack.c.l.b16 %v504
        %v539 = vunpack.c.l.b16 %v505
        %v540 = vunpack.c.l.b16 %v506
        %v541 = vunpack.c.l.b16 %v507
        %v542 = vunpack.c.l.b16 %v508
        %v543 = vpack.c.b16 %v528, %v527
        %v544 = vpack.c.b16 %v530, %v529
        %v545 = vpack.c.b16 %v532, %v531
        %v546 = vpack.c.b16 %v534, %v533
        %v547 = vpack.c.b16 %v536, %v535
        %v548 = vpack.c.b16 %v538, %v537
        %v549 = vpack.c.b16 %v540, %v539
        %v550 = vpack.c.b16 %v542, %v541
        %559 = vmatprep.subr.bf16.mxu0 0
        %560 = vmatpush1.bf16.msra.mxu0 %v543
        %561 = vmatprep.subr.bf16.mxu0 0
        %562 = vmatpush1.bf16.msra.mxu0 %v544
        %563 = vmatprep.subr.bf16.mxu0 0
        %564 = vmatpush1.bf16.msra.mxu0 %v545
        %565 = vmatprep.subr.bf16.mxu0 0
        %566 = vmatpush1.bf16.msra.mxu0 %v546
        %567 = vmatprep.subr.bf16.mxu0 0
        %568 = vmatpush1.bf16.msra.mxu0 %v547
        %569 = vmatprep.subr.bf16.mxu0 0
        %570 = vmatpush1.bf16.msra.mxu0 %v548
        %571 = vmatprep.subr.bf16.mxu0 0
        %572 = vmatpush1.bf16.msra.mxu0 %v549
        %573 = vmatprep.subr.bf16.mxu0 0
        %574 = vmatpush1.bf16.msra.mxu0 %v550
        %575 = vmatprep.subr.bf16.mxu0 0
        %576 = vmatpush1.bf16.msra.mxu0 0
        %577 = vmatprep.subr.bf16.mxu0 0
        %578 = vmatpush1.bf16.msra.mxu0 0
        %579 = vmatprep.subr.bf16.mxu0 0
        %580 = vmatpush1.bf16.msra.mxu0 0
        %581 = vmatprep.subr.bf16.mxu0 0
        %582 = vmatpush1.bf16.msra.mxu0 0
        %583 = vmatprep.subr.bf16.mxu0 0
        %584 = vmatpush1.bf16.msra.mxu0 0
        %585 = vmatprep.subr.bf16.mxu0 0
        %586 = vmatpush1.bf16.msra.mxu0 0
        %587 = vmatprep.subr.bf16.mxu0 0
        %588 = vmatpush1.bf16.msra.mxu0 0
        %589 = vmatprep.subr.bf16.mxu0 0
        %590 = vmatpush1.bf16.msra.mxu0 0
        %591 = vmatprep.mubr.bf16.mxu0 0
        %592 = vmatmul.mubr.bf16.gmra.mrb[0].mxu0 %v510
        %v593 = vpop.f32.mrb[0].mxu0
        %v594 = vadd.f32 0.0, %v593
        %v595 = vpop.f32.mrb[0].mxu0
        %v596 = vpop.f32.mrb[0].mxu0
        %v597 = vpop.f32.mrb[0].mxu0
        %598 = vdwg.mxu0
        %v599 = vadd.f32 %v509, %v594
        %600 = vst [vmem:[#allocation2] sm:$0xff] %v599
        %v601 = vld [vmem:[#allocation11] sm:$0x1]
        %v602 = vld [vmem:[#allocation12] sm:$0x1]
        %v603 = vld [vmem:[#allocation14] sm:$0x1]
        %v604 = vld [vmem:[#allocation2] sm:$0xff]
        %v606 = vlaneseq
        %v607 = vshrl.u32 %v606, 7
        %v608 = vsub.s32 0, %v607
        %v609 = vrot.slane %v601, %v608
        %v611 = vadd.f32 %v604, %v609
        %v612 = vadd.f32 %v611, %v374
        %613 = vadd.xlane.f32.xlu0 %v612
        %v614 = vpop.xlane.xlu0 %613
        %v615 = vmul.f32 %v614, 0.03125
        %v616 = vsub.f32 %v612, %v615
        %v617 = vlaneseq
        %v618 = vand.u32 %v617, 127
        %vm619 = vcmp.lt.s32.totalorder %v618, 32
        %v620 = vsel %vm619, 1, 0
        %vm621 = vcmp.eq.s32.totalorder %v620, 1
        %v622 = vsel %vm621, %v616, 0.0
        %v623 = vmul.f32 %v622, %v622
        %624 = vadd.xlane.f32.xlu0 %v623
        %v625 = vpop.xlane.xlu0 %624
        %v626 = vmul.f32 %v625, 0.03125
        %v627 = vadd.f32 %v626, 1e-05
        %v628 = vrsqrt.pop %v627
        %v629 = vmul.f32 %v622, %v628
        %v631 = vlaneseq
        %v632 = vshrl.u32 %v631, 7
        %v633 = vsub.s32 0, %v632
        %v634 = vrot.slane %v602, %v633
        %v636 = vmul.f32 %v629, %v634
        %v638 = vlaneseq
        %v639 = vshrl.u32 %v638, 7
        %v640 = vsub.s32 0, %v639
        %v641 = vrot.slane %v603, %v640
        %v643 = vadd.f32 %v636, %v641
        %644 = vst [vmem:[%s372] sm:$0xff] %v643
        %s645 = sand.u32 %s187, 1
        %s646 = scalar_lea.sflag [#allocation5], %s645
        %s647 = sand.u32 %s187, 1
        %s648 = smul.addr %s647, 8
        %s649 = scalar_lea.vmem [#allocation15], %s648
        // Predicated region
        $region77: #{poswise_ffn_prepared.1} parent=47 // pred_check
          %p650 = pneg %p197
        $region78: #{poswise_ffn_prepared.1} parent=47 // pred_check_branch
          %652 = sbr.rel (%p650) target = $region80
        $region79: #{poswise_ffn_prepared.1} parent=47 // pred_region
          %s654 = ssub.s32 128, 128
          %655 = vsyncadd %s646, %s654
          %s656 = smul.addr %s27, 128
          %s657 = scalar_lea.hbm %s7, %s656
          %s659 = sshll.u32 %s649, 4
          %s660 = int_to_ptr.vmem [resolvable:$true] %s659
          %662 = dma.vmem_to_hbm [thread:$0]  %s660, 128, %s657, %s646
        $region80: #{poswise_ffn_prepared.1} parent=47 // pred_fallthru
          _
      $region48: #{poswise_ffn_prepared.1} parent=5 // pred_fallthru
        _
      %p663 = scmp.le.s32.totalorder 2, %s22
      // Predicated region
      $region81: #{poswise_ffn_prepared.1} parent=5 // pred_check
        %p664 = pneg %p663
      $region82: #{poswise_ffn_prepared.1} parent=5 // pred_check_branch
        %666 = sbr.rel (%p664) target = $region84
      $region83: #{poswise_ffn_prepared.1} parent=5 // pred_region
        %s667 = ssub.s32 %s22, 2
        // Predicated region
        $region85: #{poswise_ffn_prepared.1} parent=83 // pred_check
          %p668 = pneg %p203
        $region86: #{poswise_ffn_prepared.1} parent=83 // pred_check_branch
          %670 = sbr.rel (%p668) target = $region88
        $region87: #{poswise_ffn_prepared.1} parent=83 // pred_region
          %s671 = sand.u32 %s188, 1
          %s672 = scalar_lea.sflag [#allocation5], %s671
          %s673 = sand.u32 %s188, 1
          %s674 = smul.addr %s673, 8
          %s675 = scalar_lea.vmem [#allocation15], %s674
          %676 = dma.done %s672, 128
        $region88: #{poswise_ffn_prepared.1} parent=83 // pred_fallthru
          _
      $region84: #{poswise_ffn_prepared.1} parent=5 // pred_fallthru
        _
    $region6: #{poswise_ffn_prepared.1} parent=1 // loop_footer
      %s26 = sadd.s32 1, %s22
    $region7: #{poswise_ffn_prepared.1} parent=1 // loop_footer_branch
      %21 = sbr.rel target = $region3
    $region8: #{poswise_ffn_prepared.1} parent=1 // loop_exit
      _
    %677 = vsyncpa [#allocation4], 1
    %s678 = scalar_lea.sflag [#allocation4], 1
    %679 = vsyncpa %s678, 1
    %680 = vsyncpa [#allocation7], 1
    %681 = vsyncpa [#allocation10], 1
    %682 = vsyncpa [#allocation13], 1
    %683 = vsyncpa [#allocation5], 1
    %s684 = scalar_lea.sflag [#allocation5], 1
    %685 = vsyncpa %s684, 1

</llo_original>
